<compile_context>
chip_gen: v6e
topology: v6e:2x2x1
jax: 0.10.0
libtpu: 0.0.40
codegen_flags: <defaults>
</compile_context>

<pallas_src>
import functools

import jax
import jax.numpy as jnp
from jax.experimental import pallas as pl
from jax.experimental.pallas import tpu as pltpu

LANES = 128
IN_FEATURES = 28 * 28   # 784
HIDDEN = 50
OUT = 10


def _round_up(n, m):
    return (n + m - 1) // m * m


def _mlp_kernel(x_ref, w1_ref, b1_ref, w2_ref, b2_ref, w3_ref, b3_ref, o_ref):
    # Hot path: 3 matmuls + ReLU + masked log_softmax, all VMEM resident.
    x = x_ref[...]                                              # (TB, 784) bf16

    h1 = jnp.dot(x, w1_ref[...], preferred_element_type=jnp.float32)
    h1 = jnp.maximum(h1 + b1_ref[...], 0.0)                     # padded cols stay 0
    # fc1_drop: identity (eval mode)

    h2 = jnp.dot(h1.astype(jnp.bfloat16), w2_ref[...],
                 preferred_element_type=jnp.float32)
    h2 = jnp.maximum(h2 + b2_ref[...], 0.0)                     # padded cols stay 0
    # fc2_drop: identity (eval mode)

    logits = jnp.dot(h2.astype(jnp.bfloat16), w3_ref[...],
                     preferred_element_type=jnp.float32) + b3_ref[...]

    # log_softmax over the 10 real logits only: padded lanes -> -inf so they
    # contribute nothing to the row max or to sum(exp).  max/sum hit the XLU,
    # exp/log hit the EUP -- both off the VALU critical slot.
    lane = jax.lax.broadcasted_iota(jnp.int32, logits.shape, 1)
    real = lane < OUT
    logits = jnp.where(real, logits, -jnp.inf)
    m = jnp.max(logits, axis=-1, keepdims=True)
    z = logits - m
    lse = jnp.log(jnp.sum(jnp.exp(z), axis=-1, keepdims=True))
    o_ref[...] = jnp.where(real, z - lse, 0.0)


@functools.partial(jax.jit, static_argnames=("tb",))
def net_forward(x, params, *, tb=1024):
    """x: arbitrary leading dims, flattened to (-1, 784) like the PyTorch view.

    `params` must come from `pack_params()` (lane-padded, bf16 weights).
    `tb` is the batch tile; 1024 fits comfortably in the default 32 MiB scoped
    VMEM on every generation (raise tb + vmem_limit_bytes on v5e/v6e if desired).
    """
    w1, b1, w2, b2, w3, b3 = params
    xf = x.reshape(-1, IN_FEATURES)
    B = xf.shape[0]

    # Batch tile: multiple of 8 sublanes; pad the batch up to a whole tile so
    # no partial-tile masking is needed (padded rows are sliced off below).
    TB = min(_round_up(tb, 8), _round_up(B, 8))
    Bp = _round_up(B, TB)
    if Bp != B:
        xf = jnp.pad(xf, ((0, Bp - B), (0, 0)))
    xb = xf.astype(jnp.bfloat16)

    vmem = pltpu.MemorySpace.VMEM

    def resident(a):   # weights/biases: same block every grid step -> VMEM resident
        return pl.BlockSpec(a.shape, lambda i: (0,) * a.ndim, memory_space=vmem)

    cost = pl.CostEstimate(
        flops=2 * Bp * (IN_FEATURES * HIDDEN + HIDDEN * HIDDEN + HIDDEN * OUT),
        transcendentals=Bp * (OUT + 1),
        bytes_accessed=(Bp * IN_FEATURES * 2            # bf16 x read (dominant)
                        + Bp * LANES * 4                # f32 output write
                        + (IN_FEATURES * LANES + 2 * LANES * LANES) * 2
                        + 3 * LANES * 4),
    )

    out = pl.pallas_call(
        _mlp_kernel,
        out_shape=jax.ShapeDtypeStruct((Bp, LANES), jnp.float32),
        grid=(Bp // TB,),
        in_specs=[
            pl.BlockSpec((TB, IN_FEATURES), lambda i: (i, 0), memory_space=vmem),
            resident(w1), resident(b1),
            resident(w2), resident(b2),
            resident(w3), resident(b3),
        ],
        out_specs=pl.BlockSpec((TB, LANES), lambda i: (i, 0), memory_space=vmem),
        compiler_params=pltpu.CompilerParams(
            dimension_semantics=("parallel",)),
        cost_estimate=cost,
    )(xb, w1, b1, w2, b2, w3, b3)

    return out[:B, :OUT]


def init_params(key):
    """Deterministic init mimicking torch.nn.Linear (uniform ±1/sqrt(fan_in)).

    Weights stored as (in_features, out_features) so the kernel computes x @ W + b.
    """
    def linear(key, fan_in, fan_out):
        kw, kb = jax.random.split(key)
        bound = 1.0 / jnp.sqrt(fan_in)
        w = jax.random.uniform(kw, (fan_in, fan_out), jnp.float32, -bound, bound)
        b = jax.random.uniform(kb, (1, fan_out), jnp.float32, -bound, bound)
        return w, b

    k1, k2, k3 = jax.random.split(key, 3)
    w1, b1 = linear(k1, IN_FEATURES, HIDDEN)
    w2, b2 = linear(k2, HIDDEN, HIDDEN)
    w3, b3 = linear(k3, HIDDEN, OUT)
    return (w1, b1, w2, b2, w3, b3)


def pack_params(params):
    """Zero-pad every feature dim to 128 lanes; weights -> bf16, biases -> f32.

    Zero padding keeps the padded hidden/logit lanes exactly 0, so the math on
    the real lanes is unchanged.
    """
    w1, b1, w2, b2, w3, b3 = params

    def pad(a, rows, cols):
        out = jnp.zeros((rows, cols), jnp.float32)
        return out.at[: a.shape[0], : a.shape[1]].set(a)

    return (
        pad(w1, IN_FEATURES, LANES).astype(jnp.bfloat16),
        pad(b1, 1, LANES),
        pad(w2, LANES, LANES).astype(jnp.bfloat16),
        pad(b2, 1, LANES),
        pad(w3, LANES, LANES).astype(jnp.bfloat16),
        pad(b3, 1, LANES),
    )


def _reference(x, packed):
    """Plain-JAX reference using the same padded/bf16 params & f32 accumulation."""
    w1, b1, w2, b2, w3, b3 = packed
    xf = x.reshape(-1, IN_FEATURES).astype(jnp.bfloat16)
    h1 = jnp.maximum(jnp.dot(xf, w1, preferred_element_type=jnp.float32) + b1, 0.0)
    h2 = jnp.maximum(jnp.dot(h1.astype(jnp.bfloat16), w2,
                             preferred_element_type=jnp.float32) + b2, 0.0)
    logits = jnp.dot(h2.astype(jnp.bfloat16), w3,
                     preferred_element_type=jnp.float32) + b3
    return jax.nn.log_softmax(logits[:, :OUT], axis=-1)


if __name__ == "__main__":
    key = jax.random.PRNGKey(0)
    k_in, k_p = jax.random.split(key)

    # MNIST-like input: (batch=2, 1, 28, 28) NCHW, flattened inside forward.
    x = jax.random.normal(k_in, (2, 1, 28, 28), jnp.float32)
    params = pack_params(init_params(k_p))

    out = net_forward(x, params)
    out = jax.block_until_ready(out)

    ref = _reference(x, params)
    assert out.shape == (2, OUT), out.shape
    assert bool(jnp.allclose(out, ref, atol=2e-3, rtol=2e-3)), "mismatch vs reference"
    # log-probs must exponentiate to a valid distribution over the 10 classes
    assert bool(jnp.allclose(jnp.sum(jnp.exp(out), axis=-1), 1.0, atol=1e-4))

    print("KERNEL_OK")
</pallas_src>

<mosaic_0001>
module attributes {stable_mosaic.version = 11 : i64} {
  func.func @_mlp_kernel(%arg0: i32, %arg1: memref<8x784xbf16, #tpu.memory_space<vmem>>, %arg2: memref<784x128xbf16, #tpu.memory_space<vmem>>, %arg3: memref<1x128xf32, #tpu.memory_space<vmem>>, %arg4: memref<128x128xbf16, #tpu.memory_space<vmem>>, %arg5: memref<1x128xf32, #tpu.memory_space<vmem>>, %arg6: memref<128x128xbf16, #tpu.memory_space<vmem>>, %arg7: memref<1x128xf32, #tpu.memory_space<vmem>>, %arg8: memref<8x128xf32, #tpu.memory_space<vmem>>) attributes {dimension_semantics = [#tpu.dimension_semantics<parallel>], iteration_bounds = array<i64: 1>, scalar_prefetch = 0 : i64, scratch_operands = 0 : i64, tpu.core_type = #tpu.core_type<tc>, window_params = [{transform_indices = @transform_0, window_bounds = array<i64: 8, 784>}, {pipeline_mode = #tpu.pipeline_mode<synchronous>, transform_indices = @transform_1, window_bounds = array<i64: 784, 128>}, {pipeline_mode = #tpu.pipeline_mode<synchronous>, transform_indices = @transform_2, window_bounds = array<i64: 1, 128>}, {pipeline_mode = #tpu.pipeline_mode<synchronous>, transform_indices = @transform_3, window_bounds = array<i64: 128, 128>}, {pipeline_mode = #tpu.pipeline_mode<synchronous>, transform_indices = @transform_4, window_bounds = array<i64: 1, 128>}, {pipeline_mode = #tpu.pipeline_mode<synchronous>, transform_indices = @transform_5, window_bounds = array<i64: 128, 128>}, {pipeline_mode = #tpu.pipeline_mode<synchronous>, transform_indices = @transform_6, window_bounds = array<i64: 1, 128>}, {transform_indices = @transform_7, window_bounds = array<i64: 8, 128>}]} {
    %c0 = arith.constant 0 : index
    %c0_0 = arith.constant 0 : index
    %0 = vector.load %arg1[%c0, %c0_0] : memref<8x784xbf16, #tpu.memory_space<vmem>>, vector<8x784xbf16>
    %c0_1 = arith.constant 0 : index
    %c0_2 = arith.constant 0 : index
    %1 = vector.load %arg2[%c0_1, %c0_2] : memref<784x128xbf16, #tpu.memory_space<vmem>>, vector<784x128xbf16>
    %cst = arith.constant dense<0.000000e+00> : vector<8x128xf32>
    %2 = tpu.matmul %0, %1, %cst {dimension_numbers = #tpu.dot_dimension_numbers<[1], [0], [0], [1], [0, 0, 1, 1], [], []>} : vector<8x784xbf16>, vector<784x128xbf16>, vector<8x128xf32> -> vector<8x128xf32>
    %c0_3 = arith.constant 0 : index
    %c0_4 = arith.constant 0 : index
    %3 = vector.load %arg3[%c0_3, %c0_4] : memref<1x128xf32, #tpu.memory_space<vmem>>, vector<1x128xf32>
    %4 = vector.broadcast %3 : vector<1x128xf32> to vector<8x128xf32>
    %5 = arith.addf %2, %4 : vector<8x128xf32>
    %cst_5 = arith.constant 0.000000e+00 : f32
    %6 = vector.broadcast %cst_5 : f32 to vector<8x128xf32>
    %7 = arith.maximumf %5, %6 : vector<8x128xf32>
    %8 = arith.truncf %7 : vector<8x128xf32> to vector<8x128xbf16>
    %c0_6 = arith.constant 0 : index
    %c0_7 = arith.constant 0 : index
    %9 = vector.load %arg4[%c0_6, %c0_7] : memref<128x128xbf16, #tpu.memory_space<vmem>>, vector<128x128xbf16>
    %cst_8 = arith.constant dense<0.000000e+00> : vector<8x128xf32>
    %10 = tpu.matmul %8, %9, %cst_8 {dimension_numbers = #tpu.dot_dimension_numbers<[1], [0], [0], [1], [0, 0, 1, 1], [], []>} : vector<8x128xbf16>, vector<128x128xbf16>, vector<8x128xf32> -> vector<8x128xf32>
    %c0_9 = arith.constant 0 : index
    %c0_10 = arith.constant 0 : index
    %11 = vector.load %arg5[%c0_9, %c0_10] : memref<1x128xf32, #tpu.memory_space<vmem>>, vector<1x128xf32>
    %12 = vector.broadcast %11 : vector<1x128xf32> to vector<8x128xf32>
    %13 = arith.addf %10, %12 : vector<8x128xf32>
    %cst_11 = arith.constant 0.000000e+00 : f32
    %14 = vector.broadcast %cst_11 : f32 to vector<8x128xf32>
    %15 = arith.maximumf %13, %14 : vector<8x128xf32>
    %16 = arith.truncf %15 : vector<8x128xf32> to vector<8x128xbf16>
    %c0_12 = arith.constant 0 : index
    %c0_13 = arith.constant 0 : index
    %17 = vector.load %arg6[%c0_12, %c0_13] : memref<128x128xbf16, #tpu.memory_space<vmem>>, vector<128x128xbf16>
    %cst_14 = arith.constant dense<0.000000e+00> : vector<8x128xf32>
    %18 = tpu.matmul %16, %17, %cst_14 {dimension_numbers = #tpu.dot_dimension_numbers<[1], [0], [0], [1], [0, 0, 1, 1], [], []>} : vector<8x128xbf16>, vector<128x128xbf16>, vector<8x128xf32> -> vector<8x128xf32>
    %c0_15 = arith.constant 0 : index
    %c0_16 = arith.constant 0 : index
    %19 = vector.load %arg7[%c0_15, %c0_16] : memref<1x128xf32, #tpu.memory_space<vmem>>, vector<1x128xf32>
    %20 = vector.broadcast %19 : vector<1x128xf32> to vector<8x128xf32>
    %21 = arith.addf %18, %20 : vector<8x128xf32>
    %22 = tpu.iota {dimensions = array<i32: 1>} : vector<8x128xi32>
    %c10_i32 = arith.constant 10 : i32
    %23 = vector.broadcast %c10_i32 : i32 to vector<8x128xi32>
    %24 = arith.cmpi slt, %22, %23 : vector<8x128xi32>
    %cst_17 = arith.constant 0xFF800000 : f32
    %25 = vector.broadcast %cst_17 : f32 to vector<8x128xf32>
    %26 = arith.select %24, %21, %25 : vector<8x128xi1>, vector<8x128xf32>
    %cst_18 = arith.constant dense<0xFF800000> : vector<8xf32>
    %27 = vector.multi_reduction <maximumf>, %26, %cst_18 [1] : vector<8x128xf32> to vector<8xf32>
    %28 = vector.shape_cast %27 : vector<8xf32> to vector<8x1xf32>
    %29 = vector.broadcast %28 : vector<8x1xf32> to vector<8x128xf32>
    %30 = arith.subf %26, %29 : vector<8x128xf32>
    %31 = math.exp %30 : vector<8x128xf32>
    %cst_19 = arith.constant dense<0.000000e+00> : vector<8xf32>
    %32 = vector.multi_reduction <add>, %31, %cst_19 [1] : vector<8x128xf32> to vector<8xf32>
    %33 = vector.shape_cast %32 : vector<8xf32> to vector<8x1xf32>
    %34 = math.log %33 : vector<8x1xf32>
    %35 = vector.broadcast %34 : vector<8x1xf32> to vector<8x128xf32>
    %36 = arith.subf %30, %35 : vector<8x128xf32>
    %cst_20 = arith.constant 0.000000e+00 : f32
    %37 = vector.broadcast %cst_20 : f32 to vector<8x128xf32>
    %38 = arith.select %24, %36, %37 : vector<8x128xi1>, vector<8x128xf32>
    %c0_21 = arith.constant 0 : index
    %c0_22 = arith.constant 0 : index
    %39 = vector.load %arg8[%c0_21, %c0_22] : memref<8x128xf32, #tpu.memory_space<vmem>>, vector<8x128xf32>
    tpu.vector_store %arg8[%c0_21, %c0_22], %38 {strides = array<i32>} : memref<8x128xf32, #tpu.memory_space<vmem>>, vector<8x128xf32>,
    return
  }
  func.func @transform_0(%arg0: i32) -> (i32, i32) {
    %c0_i32 = arith.constant 0 : i32
    %c0_i32_0 = arith.constant 0 : i32
    return %arg0, %c0_i32 : i32, i32
  }
  func.func @transform_1(%arg0: i32) -> (i32, i32) {
    %c0_i32 = arith.constant 0 : i32
    %c0_i32_0 = arith.constant 0 : i32
    %c0_i32_1 = arith.constant 0 : i32
    return %c0_i32, %c0_i32_0 : i32, i32
  }
  func.func @transform_2(%arg0: i32) -> (i32, i32) {
    %c0_i32 = arith.constant 0 : i32
    %c0_i32_0 = arith.constant 0 : i32
    %c0_i32_1 = arith.constant 0 : i32
    return %c0_i32, %c0_i32_0 : i32, i32
  }
  func.func @transform_3(%arg0: i32) -> (i32, i32) {
    %c0_i32 = arith.constant 0 : i32
    %c0_i32_0 = arith.constant 0 : i32
    %c0_i32_1 = arith.constant 0 : i32
    return %c0_i32, %c0_i32_0 : i32, i32
  }
  func.func @transform_4(%arg0: i32) -> (i32, i32) {
    %c0_i32 = arith.constant 0 : i32
    %c0_i32_0 = arith.constant 0 : i32
    %c0_i32_1 = arith.constant 0 : i32
    return %c0_i32, %c0_i32_0 : i32, i32
  }
  func.func @transform_5(%arg0: i32) -> (i32, i32) {
    %c0_i32 = arith.constant 0 : i32
    %c0_i32_0 = arith.constant 0 : i32
    %c0_i32_1 = arith.constant 0 : i32
    return %c0_i32, %c0_i32_0 : i32, i32
  }
  func.func @transform_6(%arg0: i32) -> (i32, i32) {
    %c0_i32 = arith.constant 0 : i32
    %c0_i32_0 = arith.constant 0 : i32
    %c0_i32_1 = arith.constant 0 : i32
    return %c0_i32, %c0_i32_0 : i32, i32
  }
  func.func @transform_7(%arg0: i32) -> (i32, i32) {
    %c0_i32 = arith.constant 0 : i32
    %c0_i32_0 = arith.constant 0 : i32
    return %arg0, %c0_i32 : i32, i32
  }
}

</mosaic_0001>

<llo_original>
// kernel: net_forward.1
$region0: #{net_forward.1}
  #allocation0 [shape = 'u32[]', space=smem, size = 0x4, offset = 0x4, fixed_abs, tag = 'smem constant byte address 0x4 - core index']
  #allocation1 [shape = 'u32[144,128]{1,0:T(1,128)}', space=vmem, size = 0x12000, scoped, tag = 'internal scratch']
  %s0 = inlined_call_operand.vmem [shape: bf16[8,784], index: 0, kind: input, shape index: {}]
  %s1 = inlined_call_operand.hbm [shape: bf16[784,128], index: 1, kind: input, shape index: {}]
  %s2 = inlined_call_operand.vmem [shape: f32[1,128], index: 2, kind: input, shape index: {}]
  %s3 = inlined_call_operand.vmem [shape: bf16[128,128], index: 3, kind: input, shape index: {}]
  %s4 = inlined_call_operand.vmem [shape: f32[1,128], index: 4, kind: input, shape index: {}]
  %s5 = inlined_call_operand.vmem [shape: bf16[128,128], index: 5, kind: input, shape index: {}]
  %s6 = inlined_call_operand.vmem [shape: f32[1,128], index: 6, kind: input, shape index: {}]
  %s7 = inlined_call_operand.vmem [shape: f32[8,128], index: 7, kind: output, shape index: {}]
  %s8 = sld [smem:[#allocation0]]
  $region42: #{net_forward.1} parent=0
    _
  %s10 = ssub.s32 1, %s8
  %s11 = scalar_select 0, %s10, %s8
  $region1: #{net_forward.1} parent=0
    #allocation2 [shape = 'u8[200704]{0}', space=vmem, size = 0x31000, scoped, tag = 'input window, operand 1, single buffered']
    #allocation3 [shape = 's32[1]{0}', space=sflag, size = 0x4, scoped, tag = 'scoped memory for net_forward.1']
    %12 = vsyncpa [#allocation3], 0
    // Predicated region
    $region2: #{net_forward.1} parent=1 // pred_check
      _
    $region3: #{net_forward.1} parent=1 // pred_check_branch
      %14 = sbr.rel (0) target = $region5
    $region4: #{net_forward.1} parent=1 // pred_region
      _
    $region5: #{net_forward.1} parent=1 // pred_fallthru
      _
    // Predicated region
    $region6: #{net_forward.1} parent=1 // pred_check
      _
    $region7: #{net_forward.1} parent=1 // pred_check_branch
      %16 = sbr.rel (0) target = $region9
    $region8: #{net_forward.1} parent=1 // pred_region
      %s18 = ssub.s32 6272, 6272
      %19 = vsyncadd [#allocation3], %s18
      %s20 = sshll.u32 [#allocation2], 4
      %s21 = int_to_ptr.vmem [resolvable:$true] %s20
      %26 = dma.hbm_to_vmem [thread:$0]  %s1, 6272, %s21, [#allocation3], 64, 64, 4
    $region9: #{net_forward.1} parent=1 // pred_fallthru
      _
    // Predicated region
    $region10: #{net_forward.1} parent=1 // pred_check
      _
    $region11: #{net_forward.1} parent=1 // pred_check_branch
      %28 = sbr.rel (0) target = $region13
    $region12: #{net_forward.1} parent=1 // pred_region
      _
    $region13: #{net_forward.1} parent=1 // pred_fallthru
      _
    // Predicated region
    $region14: #{net_forward.1} parent=1 // pred_check
      _
    $region15: #{net_forward.1} parent=1 // pred_check_branch
      %30 = sbr.rel (0) target = $region17
    $region16: #{net_forward.1} parent=1 // pred_region
      _
    $region17: #{net_forward.1} parent=1 // pred_fallthru
      _
    // Predicated region
    $region18: #{net_forward.1} parent=1 // pred_check
      _
    $region19: #{net_forward.1} parent=1 // pred_check_branch
      %32 = sbr.rel (0) target = $region21
    $region20: #{net_forward.1} parent=1 // pred_region
      _
    $region21: #{net_forward.1} parent=1 // pred_fallthru
      _
    // Predicated region
    $region22: #{net_forward.1} parent=1 // pred_check
      _
    $region23: #{net_forward.1} parent=1 // pred_check_branch
      %34 = sbr.rel (0) target = $region25
    $region24: #{net_forward.1} parent=1 // pred_region
      _
    $region25: #{net_forward.1} parent=1 // pred_fallthru
      _
    // Predicated region
    $region26: #{net_forward.1} parent=1 // pred_check
      _
    $region27: #{net_forward.1} parent=1 // pred_check_branch
      %36 = sbr.rel (0) target = $region29
    $region28: #{net_forward.1} parent=1 // pred_region
      _
    $region29: #{net_forward.1} parent=1 // pred_fallthru
      _
    // Predicated region
    $region30: #{net_forward.1} parent=1 // pred_check
      _
    $region31: #{net_forward.1} parent=1 // pred_check_branch
      %38 = sbr.rel (0) target = $region33
    $region32: #{net_forward.1} parent=1 // pred_region
      %39 = dma.done [#allocation3], 6272
    $region33: #{net_forward.1} parent=1 // pred_fallthru
      _
    %v41 = vld [vmem:[%s0] sm:$0xff]
    %v42 = vld [vmem:[%s0 + $0x8] sm:$0xff]
    %v43 = vld [vmem:[%s0 + $0x10] sm:$0xff]
    %v44 = vld [vmem:[%s0 + $0x18] sm:$0xf]
    %v45 = vld [vmem:[#allocation2] sm:$0xf]
    %v46 = vld [vmem:[#allocation2 + $0x4] sm:$0xf]
    %v47 = vld [vmem:[#allocation2 + $0x8] sm:$0xf]
    %v48 = vld [vmem:[#allocation2 + $0xc] sm:$0xf]
    %v49 = vld [vmem:[#allocation2 + $0x10] sm:$0xf]
    %v50 = vld [vmem:[#allocation2 + $0x14] sm:$0xf]
    %v51 = vld [vmem:[#allocation2 + $0x18] sm:$0xf]
    %v52 = vld [vmem:[#allocation2 + $0x1c] sm:$0xf]
    %v53 = vld [vmem:[#allocation2 + $0x20] sm:$0xf]
    %v54 = vld [vmem:[#allocation2 + $0x24] sm:$0xf]
    %v55 = vld [vmem:[#allocation2 + $0x28] sm:$0xf]
    %v56 = vld [vmem:[#allocation2 + $0x2c] sm:$0xf]
    %v57 = vld [vmem:[#allocation2 + $0x30] sm:$0xf]
    %v58 = vld [vmem:[#allocation2 + $0x34] sm:$0xf]
    %v59 = vld [vmem:[#allocation2 + $0x38] sm:$0xf]
    %v60 = vld [vmem:[#allocation2 + $0x3c] sm:$0xf]
    %v61 = vld [vmem:[#allocation2 + $0x40] sm:$0xf]
    %v62 = vld [vmem:[#allocation2 + $0x44] sm:$0xf]
    %v63 = vld [vmem:[#allocation2 + $0x48] sm:$0xf]
    %v64 = vld [vmem:[#allocation2 + $0x4c] sm:$0xf]
    %v65 = vld [vmem:[#allocation2 + $0x50] sm:$0xf]
    %v66 = vld [vmem:[#allocation2 + $0x54] sm:$0xf]
    %v67 = vld [vmem:[#allocation2 + $0x58] sm:$0xf]
    %v68 = vld [vmem:[#allocation2 + $0x5c] sm:$0xf]
    %v69 = vld [vmem:[#allocation2 + $0x60] sm:$0xf]
    %v70 = vld [vmem:[#allocation2 + $0x64] sm:$0xf]
    %v71 = vld [vmem:[#allocation2 + $0x68] sm:$0xf]
    %v72 = vld [vmem:[#allocation2 + $0x6c] sm:$0xf]
    %v73 = vld [vmem:[#allocation2 + $0x70] sm:$0xf]
    %v74 = vld [vmem:[#allocation2 + $0x74] sm:$0xf]
    %v75 = vld [vmem:[#allocation2 + $0x78] sm:$0xf]
    %v76 = vld [vmem:[#allocation2 + $0x7c] sm:$0xf]
    %v77 = vld [vmem:[#allocation2 + $0x80] sm:$0xf]
    %v78 = vld [vmem:[#allocation2 + $0x84] sm:$0xf]
    %v79 = vld [vmem:[#allocation2 + $0x88] sm:$0xf]
    %v80 = vld [vmem:[#allocation2 + $0x8c] sm:$0xf]
    %v81 = vld [vmem:[#allocation2 + $0x90] sm:$0xf]
    %v82 = vld [vmem:[#allocation2 + $0x94] sm:$0xf]
    %v83 = vld [vmem:[#allocation2 + $0x98] sm:$0xf]
    %v84 = vld [vmem:[#allocation2 + $0x9c] sm:$0xf]
    %v85 = vld [vmem:[#allocation2 + $0xa0] sm:$0xf]
    %v86 = vld [vmem:[#allocation2 + $0xa4] sm:$0xf]
    %v87 = vld [vmem:[#allocation2 + $0xa8] sm:$0xf]
    %v88 = vld [vmem:[#allocation2 + $0xac] sm:$0xf]
    %v89 = vld [vmem:[#allocation2 + $0xb0] sm:$0xf]
    %v90 = vld [vmem:[#allocation2 + $0xb4] sm:$0xf]
    %v91 = vld [vmem:[#allocation2 + $0xb8] sm:$0xf]
    %v92 = vld [vmem:[#allocation2 + $0xbc] sm:$0xf]
    %v93 = vld [vmem:[#allocation2 + $0xc0] sm:$0xf]
    %v94 = vld [vmem:[#allocation2 + $0xc4] sm:$0xf]
    %v95 = vld [vmem:[#allocation2 + $0xc8] sm:$0xf]
    %v96 = vld [vmem:[#allocation2 + $0xcc] sm:$0xf]
    %v97 = vld [vmem:[#allocation2 + $0xd0] sm:$0xf]
    %v98 = vld [vmem:[#allocation2 + $0xd4] sm:$0xf]
    %v99 = vld [vmem:[#allocation2 + $0xd8] sm:$0xf]
    %v100 = vld [vmem:[#allocation2 + $0xdc] sm:$0xf]
    %v101 = vld [vmem:[#allocation2 + $0xe0] sm:$0xf]
    %v102 = vld [vmem:[#allocation2 + $0xe4] sm:$0xf]
    %v103 = vld [vmem:[#allocation2 + $0xe8] sm:$0xf]
    %v104 = vld [vmem:[#allocation2 + $0xec] sm:$0xf]
    %v105 = vld [vmem:[#allocation2 + $0xf0] sm:$0xf]
    %v106 = vld [vmem:[#allocation2 + $0xf4] sm:$0xf]
    %v107 = vld [vmem:[#allocation2 + $0xf8] sm:$0xf]
    %v108 = vld [vmem:[#allocation2 + $0xfc] sm:$0xf]
    %v109 = vld [vmem:[#allocation2 + $0x100] sm:$0xf]
    %v110 = vld [vmem:[#allocation2 + $0x104] sm:$0xf]
    %v111 = vld [vmem:[#allocation2 + $0x108] sm:$0xf]
    %v112 = vld [vmem:[#allocation2 + $0x10c] sm:$0xf]
    %v113 = vld [vmem:[#allocation2 + $0x110] sm:$0xf]
    %v114 = vld [vmem:[#allocation2 + $0x114] sm:$0xf]
    %v115 = vld [vmem:[#allocation2 + $0x118] sm:$0xf]
    %v116 = vld [vmem:[#allocation2 + $0x11c] sm:$0xf]
    %v117 = vld [vmem:[#allocation2 + $0x120] sm:$0xf]
    %v118 = vld [vmem:[#allocation2 + $0x124] sm:$0xf]
    %v119 = vld [vmem:[#allocation2 + $0x128] sm:$0xf]
    %v120 = vld [vmem:[#allocation2 + $0x12c] sm:$0xf]
    %v121 = vld [vmem:[#allocation2 + $0x130] sm:$0xf]
    %v122 = vld [vmem:[#allocation2 + $0x134] sm:$0xf]
    %v123 = vld [vmem:[#allocation2 + $0x138] sm:$0xf]
    %v124 = vld [vmem:[#allocation2 + $0x13c] sm:$0xf]
    %v125 = vld [vmem:[#allocation2 + $0x140] sm:$0xf]
    %v126 = vld [vmem:[#allocation2 + $0x144] sm:$0xf]
    %v127 = vld [vmem:[#allocation2 + $0x148] sm:$0xf]
    %v128 = vld [vmem:[#allocation2 + $0x14c] sm:$0xf]
    %v129 = vld [vmem:[#allocation2 + $0x150] sm:$0xf]
    %v130 = vld [vmem:[#allocation2 + $0x154] sm:$0xf]
    %v131 = vld [vmem:[#allocation2 + $0x158] sm:$0xf]
    %v132 = vld [vmem:[#allocation2 + $0x15c] sm:$0xf]
    %v133 = vld [vmem:[#allocation2 + $0x160] sm:$0xf]
    %v134 = vld [vmem:[#allocation2 + $0x164] sm:$0xf]
    %v135 = vld [vmem:[#allocation2 + $0x168] sm:$0xf]
    %v136 = vld [vmem:[#allocation2 + $0x16c] sm:$0xf]
    %v137 = vld [vmem:[#allocation2 + $0x170] sm:$0xf]
    %v138 = vld [vmem:[#allocation2 + $0x174] sm:$0xf]
    %v139 = vld [vmem:[#allocation2 + $0x178] sm:$0xf]
    %v140 = vld [vmem:[#allocation2 + $0x17c] sm:$0xf]
    %v141 = vld [vmem:[#allocation2 + $0x180] sm:$0xf]
    %v142 = vld [vmem:[#allocation2 + $0x184] sm:$0xf]
    %v143 = vld [vmem:[%s2] sm:$0x1]
    %v145 = vlaneseq
    %v146 = vshrl.u32 %v145, 7
    %v147 = vsub.s32 0, %v146
    %v148 = vrot.slane %v143, %v147
    %v154 = vunpack.c.l.b16 %v41
    %v155 = vunpack.c.h.b16 %v41
    %v156 = vunpack.c.l.b16 %v42
    %v157 = vunpack.c.h.b16 %v42
    %v158 = vunpack.c.l.b16 %v43
    %v159 = vunpack.c.h.b16 %v43
    %v160 = vunpack.c.l.b16 %v44
    %v161 = vpack.c.b16 %v154, %v154
    %v162 = vpack.c.b16 %v155, %v155
    %v163 = vpack.c.b16 %v156, %v156
    %v164 = vpack.c.b16 %v157, %v157
    %v165 = vpack.c.b16 %v158, %v158
    %v166 = vpack.c.b16 %v159, %v159
    %v167 = vpack.c.b16 %v160, %v160
    %v272 = vunpack.c.l.b16 %v45
    %v273 = vunpack.c.l.b16 %v46
    %v274 = vunpack.c.l.b16 %v47
    %v275 = vunpack.c.l.b16 %v48
    %v276 = vunpack.c.l.b16 %v49
    %v277 = vunpack.c.l.b16 %v50
    %v278 = vunpack.c.l.b16 %v51
    %v279 = vunpack.c.l.b16 %v52
    %v280 = vunpack.c.l.b16 %v53
    %v281 = vunpack.c.l.b16 %v54
    %v282 = vunpack.c.l.b16 %v55
    %v283 = vunpack.c.l.b16 %v56
    %v284 = vunpack.c.l.b16 %v57
    %v285 = vunpack.c.l.b16 %v58
    %v286 = vunpack.c.l.b16 %v59
    %v287 = vunpack.c.l.b16 %v60
    %v288 = vunpack.c.l.b16 %v61
    %v289 = vunpack.c.l.b16 %v62
    %v290 = vunpack.c.l.b16 %v63
    %v291 = vunpack.c.l.b16 %v64
    %v292 = vunpack.c.l.b16 %v65
    %v293 = vunpack.c.l.b16 %v66
    %v294 = vunpack.c.l.b16 %v67
    %v295 = vunpack.c.l.b16 %v68
    %v296 = vunpack.c.l.b16 %v69
    %v297 = vunpack.c.l.b16 %v70
    %v298 = vunpack.c.l.b16 %v71
    %v299 = vunpack.c.l.b16 %v72
    %v300 = vunpack.c.l.b16 %v73
    %v301 = vunpack.c.l.b16 %v74
    %v302 = vunpack.c.l.b16 %v75
    %v303 = vunpack.c.l.b16 %v76
    %v304 = vunpack.c.l.b16 %v77
    %v305 = vunpack.c.l.b16 %v78
    %v306 = vunpack.c.l.b16 %v79
    %v307 = vunpack.c.l.b16 %v80
    %v308 = vunpack.c.l.b16 %v81
    %v309 = vunpack.c.l.b16 %v82
    %v310 = vunpack.c.l.b16 %v83
    %v311 = vunpack.c.l.b16 %v84
    %v312 = vunpack.c.l.b16 %v85
    %v313 = vunpack.c.l.b16 %v86
    %v314 = vunpack.c.l.b16 %v87
    %v315 = vunpack.c.l.b16 %v88
    %v316 = vunpack.c.l.b16 %v89
    %v317 = vunpack.c.l.b16 %v90
    %v318 = vunpack.c.l.b16 %v91
    %v319 = vunpack.c.l.b16 %v92
    %v320 = vunpack.c.l.b16 %v93
    %v321 = vunpack.c.l.b16 %v94
    %v322 = vunpack.c.l.b16 %v95
    %v323 = vunpack.c.l.b16 %v96
    %v324 = vunpack.c.l.b16 %v97
    %v325 = vunpack.c.l.b16 %v98
    %v326 = vunpack.c.l.b16 %v99
    %v327 = vunpack.c.l.b16 %v100
    %v328 = vunpack.c.l.b16 %v101
    %v329 = vunpack.c.l.b16 %v102
    %v330 = vunpack.c.l.b16 %v103
    %v331 = vunpack.c.l.b16 %v104
    %v332 = vunpack.c.l.b16 %v105
    %v333 = vunpack.c.l.b16 %v106
    %v334 = vunpack.c.l.b16 %v107
    %v335 = vunpack.c.l.b16 %v108
    %v336 = vunpack.c.l.b16 %v109
    %v337 = vunpack.c.l.b16 %v110
    %v338 = vunpack.c.l.b16 %v111
    %v339 = vunpack.c.l.b16 %v112
    %v340 = vunpack.c.l.b16 %v113
    %v341 = vunpack.c.l.b16 %v114
    %v342 = vunpack.c.l.b16 %v115
    %v343 = vunpack.c.l.b16 %v116
    %v344 = vunpack.c.l.b16 %v117
    %v345 = vunpack.c.l.b16 %v118
    %v346 = vunpack.c.l.b16 %v119
    %v347 = vunpack.c.l.b16 %v120
    %v348 = vunpack.c.l.b16 %v121
    %v349 = vunpack.c.l.b16 %v122
    %v350 = vunpack.c.l.b16 %v123
    %v351 = vunpack.c.l.b16 %v124
    %v352 = vunpack.c.l.b16 %v125
    %v353 = vunpack.c.l.b16 %v126
    %v354 = vunpack.c.l.b16 %v127
    %v355 = vunpack.c.l.b16 %v128
    %v356 = vunpack.c.l.b16 %v129
    %v357 = vunpack.c.l.b16 %v130
    %v358 = vunpack.c.l.b16 %v131
    %v359 = vunpack.c.l.b16 %v132
    %v360 = vunpack.c.l.b16 %v133
    %v361 = vunpack.c.l.b16 %v134
    %v362 = vunpack.c.l.b16 %v135
    %v363 = vunpack.c.l.b16 %v136
    %v364 = vunpack.c.l.b16 %v137
    %v365 = vunpack.c.l.b16 %v138
    %v366 = vunpack.c.l.b16 %v139
    %v367 = vunpack.c.l.b16 %v140
    %v368 = vunpack.c.l.b16 %v141
    %v369 = vunpack.c.l.b16 %v142
    %v370 = vpack.c.b16 %v273, %v272
    %v371 = vpack.c.b16 %v275, %v274
    %v372 = vpack.c.b16 %v277, %v276
    %v373 = vpack.c.b16 %v279, %v278
    %v374 = vpack.c.b16 %v281, %v280
    %v375 = vpack.c.b16 %v283, %v282
    %v376 = vpack.c.b16 %v285, %v284
    %v377 = vpack.c.b16 %v287, %v286
    %v378 = vpack.c.b16 %v289, %v288
    %v379 = vpack.c.b16 %v291, %v290
    %v380 = vpack.c.b16 %v293, %v292
    %v381 = vpack.c.b16 %v295, %v294
    %v382 = vpack.c.b16 %v297, %v296
    %v383 = vpack.c.b16 %v299, %v298
    %v384 = vpack.c.b16 %v301, %v300
    %v385 = vpack.c.b16 %v303, %v302
    %v386 = vpack.c.b16 %v305, %v304
    %v387 = vpack.c.b16 %v307, %v306
    %v388 = vpack.c.b16 %v309, %v308
    %v389 = vpack.c.b16 %v311, %v310
    %v390 = vpack.c.b16 %v313, %v312
    %v391 = vpack.c.b16 %v315, %v314
    %v392 = vpack.c.b16 %v317, %v316
    %v393 = vpack.c.b16 %v319, %v318
    %v394 = vpack.c.b16 %v321, %v320
    %v395 = vpack.c.b16 %v323, %v322
    %v396 = vpack.c.b16 %v325, %v324
    %v397 = vpack.c.b16 %v327, %v326
    %v398 = vpack.c.b16 %v329, %v328
    %v399 = vpack.c.b16 %v331, %v330
    %v400 = vpack.c.b16 %v333, %v332
    %v401 = vpack.c.b16 %v335, %v334
    %v402 = vpack.c.b16 %v337, %v336
    %v403 = vpack.c.b16 %v339, %v338
    %v404 = vpack.c.b16 %v341, %v340
    %v405 = vpack.c.b16 %v343, %v342
    %v406 = vpack.c.b16 %v345, %v344
    %v407 = vpack.c.b16 %v347, %v346
    %v408 = vpack.c.b16 %v349, %v348
    %v409 = vpack.c.b16 %v351, %v350
    %v410 = vpack.c.b16 %v353, %v352
    %v411 = vpack.c.b16 %v355, %v354
    %v412 = vpack.c.b16 %v357, %v356
    %v413 = vpack.c.b16 %v359, %v358
    %v414 = vpack.c.b16 %v361, %v360
    %v415 = vpack.c.b16 %v363, %v362
    %v416 = vpack.c.b16 %v365, %v364
    %v417 = vpack.c.b16 %v367, %v366
    %v418 = vpack.c.b16 %v369, %v368
    %vm468 = vcmask 130048
    %v470 = vsel %vm468, %v167, 0
    %472 = vmatprep.subr.bf16.mxu0 0
    %473 = vmatpush1.bf16.msra.mxu0 %v377
    %474 = vmatprep.subr.bf16.mxu0 0
    %475 = vmatpush1.bf16.msra.mxu0 %v376
    %476 = vmatprep.subr.bf16.mxu0 0
    %477 = vmatpush1.bf16.msra.mxu0 %v375
    %478 = vmatprep.subr.bf16.mxu0 0
    %479 = vmatpush1.bf16.msra.mxu0 %v374
    %480 = vmatprep.subr.bf16.mxu0 0
    %481 = vmatpush1.bf16.msra.mxu0 %v373
    %482 = vmatprep.subr.bf16.mxu0 0
    %483 = vmatpush1.bf16.msra.mxu0 %v372
    %484 = vmatprep.subr.bf16.mxu0 0
    %485 = vmatpush1.bf16.msra.mxu0 %v371
    %486 = vmatprep.subr.bf16.mxu0 0
    %487 = vmatpush1.bf16.msra.mxu0 %v370
    %488 = vmatprep.subr.bf16.mxu0 0
    %489 = vmatpush2.bf16.msra.mxu0 %v385
    %490 = vmatprep.subr.bf16.mxu0 0
    %491 = vmatpush2.bf16.msra.mxu0 %v384
    %492 = vmatprep.subr.bf16.mxu0 0
    %493 = vmatpush2.bf16.msra.mxu0 %v383
    %494 = vmatprep.subr.bf16.mxu0 0
    %495 = vmatpush2.bf16.msra.mxu0 %v382
    %496 = vmatprep.subr.bf16.mxu0 0
    %497 = vmatpush2.bf16.msra.mxu0 %v381
    %498 = vmatprep.subr.bf16.mxu0 0
    %499 = vmatpush2.bf16.msra.mxu0 %v380
    %500 = vmatprep.subr.bf16.mxu0 0
    %501 = vmatpush2.bf16.msra.mxu0 %v379
    %502 = vmatprep.subr.bf16.mxu0 0
    %503 = vmatpush2.bf16.msra.mxu0 %v378
    %504 = vmatprep.mubr.bf16.mxu0 %v162
    %505 = vmatmul.mubr.bf16.gmra.mxu0 %v161
    %v506 = vpop.f32.mrf.mxu0
    %v507 = vadd.f32 %v148, %v506
    %v508 = vpop.f32.mrf.mxu0
    %v509 = vpop.f32.mrf.mxu0
    %v510 = vpop.f32.mrf.mxu0
    %511 = vdwg.mxu0
    %512 = vmatprep.subr.bf16.mxu0 0
    %513 = vmatpush1.bf16.msra.mxu0 %v393
    %514 = vmatprep.subr.bf16.mxu0 0
    %515 = vmatpush1.bf16.msra.mxu0 %v392
    %516 = vmatprep.subr.bf16.mxu0 0
    %517 = vmatpush1.bf16.msra.mxu0 %v391
    %518 = vmatprep.subr.bf16.mxu0 0
    %519 = vmatpush1.bf16.msra.mxu0 %v390
    %520 = vmatprep.subr.bf16.mxu0 0
    %521 = vmatpush1.bf16.msra.mxu0 %v389
    %522 = vmatprep.subr.bf16.mxu0 0
    %523 = vmatpush1.bf16.msra.mxu0 %v388
    %524 = vmatprep.subr.bf16.mxu0 0
    %525 = vmatpush1.bf16.msra.mxu0 %v387
    %526 = vmatprep.subr.bf16.mxu0 0
    %527 = vmatpush1.bf16.msra.mxu0 %v386
    %528 = vmatprep.subr.bf16.mxu0 0
    %529 = vmatpush2.bf16.msra.mxu0 %v401
    %530 = vmatprep.subr.bf16.mxu0 0
    %531 = vmatpush2.bf16.msra.mxu0 %v400
    %532 = vmatprep.subr.bf16.mxu0 0
    %533 = vmatpush2.bf16.msra.mxu0 %v399
    %534 = vmatprep.subr.bf16.mxu0 0
    %535 = vmatpush2.bf16.msra.mxu0 %v398
    %536 = vmatprep.subr.bf16.mxu0 0
    %537 = vmatpush2.bf16.msra.mxu0 %v397
    %538 = vmatprep.subr.bf16.mxu0 0
    %539 = vmatpush2.bf16.msra.mxu0 %v396
    %540 = vmatprep.subr.bf16.mxu0 0
    %541 = vmatpush2.bf16.msra.mxu0 %v395
    %542 = vmatprep.subr.bf16.mxu0 0
    %543 = vmatpush2.bf16.msra.mxu0 %v394
    %544 = vmatprep.mubr.bf16.mxu0 %v164
    %545 = vmatmul.mubr.bf16.gmra.mxu0 %v163
    %v546 = vpop.f32.mrf.mxu0
    %v547 = vadd.f32 %v507, %v546
    %v548 = vpop.f32.mrf.mxu0
    %v549 = vpop.f32.mrf.mxu0
    %v550 = vpop.f32.mrf.mxu0
    %551 = vdwg.mxu0
    %552 = vmatprep.subr.bf16.mxu0 0
    %553 = vmatpush1.bf16.msra.mxu0 %v409
    %554 = vmatprep.subr.bf16.mxu0 0
    %555 = vmatpush1.bf16.msra.mxu0 %v408
    %556 = vmatprep.subr.bf16.mxu0 0
    %557 = vmatpush1.bf16.msra.mxu0 %v407
    %558 = vmatprep.subr.bf16.mxu0 0
    %559 = vmatpush1.bf16.msra.mxu0 %v406
    %560 = vmatprep.subr.bf16.mxu0 0
    %561 = vmatpush1.bf16.msra.mxu0 %v405
    %562 = vmatprep.subr.bf16.mxu0 0
    %563 = vmatpush1.bf16.msra.mxu0 %v404
    %564 = vmatprep.subr.bf16.mxu0 0
    %565 = vmatpush1.bf16.msra.mxu0 %v403
    %566 = vmatprep.subr.bf16.mxu0 0
    %567 = vmatpush1.bf16.msra.mxu0 %v402
    %568 = vmatprep.subr.bf16.mxu0 0
    %569 = vmatpush2.bf16.msra.mxu0 %v417
    %570 = vmatprep.subr.bf16.mxu0 0
    %571 = vmatpush2.bf16.msra.mxu0 %v416
    %572 = vmatprep.subr.bf16.mxu0 0
    %573 = vmatpush2.bf16.msra.mxu0 %v415
    %574 = vmatprep.subr.bf16.mxu0 0
    %575 = vmatpush2.bf16.msra.mxu0 %v414
    %576 = vmatprep.subr.bf16.mxu0 0
    %577 = vmatpush2.bf16.msra.mxu0 %v413
    %578 = vmatprep.subr.bf16.mxu0 0
    %579 = vmatpush2.bf16.msra.mxu0 %v412
    %580 = vmatprep.subr.bf16.mxu0 0
    %581 = vmatpush2.bf16.msra.mxu0 %v411
    %582 = vmatprep.subr.bf16.mxu0 0
    %583 = vmatpush2.bf16.msra.mxu0 %v410
    %584 = vmatprep.mubr.bf16.mxu0 %v166
    %585 = vmatmul.mubr.bf16.gmra.mxu0 %v165
    %v586 = vpop.f32.mrf.mxu0
    %v587 = vadd.f32 %v547, %v586
    %v588 = vpop.f32.mrf.mxu0
    %v589 = vpop.f32.mrf.mxu0
    %v590 = vpop.f32.mrf.mxu0
    %591 = vdwg.mxu0
    %592 = vmatprep.subr.bf16.mxu0 0
    %593 = vmatpush1.bf16.msra.mxu0 0
    %594 = vmatprep.subr.bf16.mxu0 0
    %595 = vmatpush1.bf16.msra.mxu0 0
    %596 = vmatprep.subr.bf16.mxu0 0
    %597 = vmatpush1.bf16.msra.mxu0 0
    %598 = vmatprep.subr.bf16.mxu0 0
    %599 = vmatpush1.bf16.msra.mxu0 0
    %600 = vmatprep.subr.bf16.mxu0 0
    %601 = vmatpush1.bf16.msra.mxu0 0
    %602 = vmatprep.subr.bf16.mxu0 0
    %603 = vmatpush1.bf16.msra.mxu0 0
    %604 = vmatprep.subr.bf16.mxu0 0
    %605 = vmatpush1.bf16.msra.mxu0 0
    %606 = vmatprep.subr.bf16.mxu0 0
    %607 = vmatpush1.bf16.msra.mxu0 %v418
    %608 = vmatprep.subr.bf16.mxu0 0
    %609 = vmatpush2.bf16.msra.mxu0 0
    %610 = vmatprep.subr.bf16.mxu0 0
    %611 = vmatpush2.bf16.msra.mxu0 0
    %612 = vmatprep.subr.bf16.mxu0 0
    %613 = vmatpush2.bf16.msra.mxu0 0
    %614 = vmatprep.subr.bf16.mxu0 0
    %615 = vmatpush2.bf16.msra.mxu0 0
    %616 = vmatprep.subr.bf16.mxu0 0
    %617 = vmatpush2.bf16.msra.mxu0 0
    %618 = vmatprep.subr.bf16.mxu0 0
    %619 = vmatpush2.bf16.msra.mxu0 0
    %620 = vmatprep.subr.bf16.mxu0 0
    %621 = vmatpush2.bf16.msra.mxu0 0
    %622 = vmatprep.subr.bf16.mxu0 0
    %623 = vmatpush2.bf16.msra.mxu0 0
    %624 = vmatprep.mubr.bf16.mxu0 0
    %625 = vmatmul.mubr.bf16.gmra.mxu0 %v470
    %v626 = vpop.f32.mrf.mxu0
    %v627 = vadd.f32 %v587, %v626
    %v628 = vpop.f32.mrf.mxu0
    %v629 = vpop.f32.mrf.mxu0
    %v630 = vpop.f32.mrf.mxu0
    %631 = vdwg.mxu0
    %v632 = vmax.f32 %v627, 0.0
    %v633 = vpack.c.bf16 %v632, %v632
    %v634 = vld [vmem:[%s3] sm:$0xf]
    %v635 = vld [vmem:[%s3 + $0x4] sm:$0xf]
    %v636 = vld [vmem:[%s3 + $0x8] sm:$0xf]
    %v637 = vld [vmem:[%s3 + $0xc] sm:$0xf]
    %v638 = vld [vmem:[%s3 + $0x10] sm:$0xf]
    %v639 = vld [vmem:[%s3 + $0x14] sm:$0xf]
    %v640 = vld [vmem:[%s3 + $0x18] sm:$0xf]
    %v641 = vld [vmem:[%s3 + $0x1c] sm:$0xf]
    %v642 = vld [vmem:[%s3 + $0x20] sm:$0xf]
    %v643 = vld [vmem:[%s3 + $0x24] sm:$0xf]
    %v644 = vld [vmem:[%s3 + $0x28] sm:$0xf]
    %v645 = vld [vmem:[%s3 + $0x2c] sm:$0xf]
    %v646 = vld [vmem:[%s3 + $0x30] sm:$0xf]
    %v647 = vld [vmem:[%s3 + $0x34] sm:$0xf]
    %v648 = vld [vmem:[%s3 + $0x38] sm:$0xf]
    %v649 = vld [vmem:[%s3 + $0x3c] sm:$0xf]
    %v650 = vld [vmem:[%s4] sm:$0x1]
    %v652 = vlaneseq
    %v653 = vshrl.u32 %v652, 7
    %v654 = vsub.s32 0, %v653
    %v655 = vrot.slane %v650, %v654
    %v673 = vunpack.c.l.b16 %v634
    %v674 = vunpack.c.l.b16 %v635
    %v675 = vunpack.c.l.b16 %v636
    %v676 = vunpack.c.l.b16 %v637
    %v677 = vunpack.c.l.b16 %v638
    %v678 = vunpack.c.l.b16 %v639
    %v679 = vunpack.c.l.b16 %v640
    %v680 = vunpack.c.l.b16 %v641
    %v681 = vunpack.c.l.b16 %v642
    %v682 = vunpack.c.l.b16 %v643
    %v683 = vunpack.c.l.b16 %v644
    %v684 = vunpack.c.l.b16 %v645
    %v685 = vunpack.c.l.b16 %v646
    %v686 = vunpack.c.l.b16 %v647
    %v687 = vunpack.c.l.b16 %v648
    %v688 = vunpack.c.l.b16 %v649
    %v689 = vpack.c.b16 %v674, %v673
    %v690 = vpack.c.b16 %v676, %v675
    %v691 = vpack.c.b16 %v678, %v677
    %v692 = vpack.c.b16 %v680, %v679
    %v693 = vpack.c.b16 %v682, %v681
    %v694 = vpack.c.b16 %v684, %v683
    %v695 = vpack.c.b16 %v686, %v685
    %v696 = vpack.c.b16 %v688, %v687
    %705 = vmatprep.subr.bf16.mxu0 0
    %706 = vmatpush1.bf16.msra.mxu0 %v696
    %707 = vmatprep.subr.bf16.mxu0 0
    %708 = vmatpush1.bf16.msra.mxu0 %v695
    %709 = vmatprep.subr.bf16.mxu0 0
    %710 = vmatpush1.bf16.msra.mxu0 %v694
    %711 = vmatprep.subr.bf16.mxu0 0
    %712 = vmatpush1.bf16.msra.mxu0 %v693
    %713 = vmatprep.subr.bf16.mxu0 0
    %714 = vmatpush1.bf16.msra.mxu0 %v692
    %715 = vmatprep.subr.bf16.mxu0 0
    %716 = vmatpush1.bf16.msra.mxu0 %v691
    %717 = vmatprep.subr.bf16.mxu0 0
    %718 = vmatpush1.bf16.msra.mxu0 %v690
    %719 = vmatprep.subr.bf16.mxu0 0
    %720 = vmatpush1.bf16.msra.mxu0 %v689
    %721 = vmatprep.subr.bf16.mxu0 0
    %722 = vmatpush2.bf16.msra.mxu0 0
    %723 = vmatprep.subr.bf16.mxu0 0
    %724 = vmatpush2.bf16.msra.mxu0 0
    %725 = vmatprep.subr.bf16.mxu0 0
    %726 = vmatpush2.bf16.msra.mxu0 0
    %727 = vmatprep.subr.bf16.mxu0 0
    %728 = vmatpush2.bf16.msra.mxu0 0
    %729 = vmatprep.subr.bf16.mxu0 0
    %730 = vmatpush2.bf16.msra.mxu0 0
    %731 = vmatprep.subr.bf16.mxu0 0
    %732 = vmatpush2.bf16.msra.mxu0 0
    %733 = vmatprep.subr.bf16.mxu0 0
    %734 = vmatpush2.bf16.msra.mxu0 0
    %735 = vmatprep.subr.bf16.mxu0 0
    %736 = vmatpush2.bf16.msra.mxu0 0
    %737 = vmatprep.mubr.bf16.mxu0 0
    %738 = vmatmul.mubr.bf16.gmra.mxu0 %v633
    %v739 = vpop.f32.mrf.mxu0
    %v740 = vadd.f32 %v655, %v739
    %v741 = vpop.f32.mrf.mxu0
    %v742 = vpop.f32.mrf.mxu0
    %v743 = vpop.f32.mrf.mxu0
    %744 = vdwg.mxu0
    %v745 = vmax.f32 %v740, 0.0
    %v746 = vpack.c.bf16 %v745, %v745
    %v747 = vld [vmem:[%s5] sm:$0xf]
    %v748 = vld [vmem:[%s5 + $0x4] sm:$0xf]
    %v749 = vld [vmem:[%s5 + $0x8] sm:$0xf]
    %v750 = vld [vmem:[%s5 + $0xc] sm:$0xf]
    %v751 = vld [vmem:[%s5 + $0x10] sm:$0xf]
    %v752 = vld [vmem:[%s5 + $0x14] sm:$0xf]
    %v753 = vld [vmem:[%s5 + $0x18] sm:$0xf]
    %v754 = vld [vmem:[%s5 + $0x1c] sm:$0xf]
    %v755 = vld [vmem:[%s5 + $0x20] sm:$0xf]
    %v756 = vld [vmem:[%s5 + $0x24] sm:$0xf]
    %v757 = vld [vmem:[%s5 + $0x28] sm:$0xf]
    %v758 = vld [vmem:[%s5 + $0x2c] sm:$0xf]
    %v759 = vld [vmem:[%s5 + $0x30] sm:$0xf]
    %v760 = vld [vmem:[%s5 + $0x34] sm:$0xf]
    %v761 = vld [vmem:[%s5 + $0x38] sm:$0xf]
    %v762 = vld [vmem:[%s5 + $0x3c] sm:$0xf]
    %v763 = vld [vmem:[%s6] sm:$0x1]
    %v765 = vlaneseq
    %v766 = vshrl.u32 %v765, 7
    %v767 = vsub.s32 0, %v766
    %v768 = vrot.slane %v763, %v767
    %v786 = vunpack.c.l.b16 %v747
    %v787 = vunpack.c.l.b16 %v748
    %v788 = vunpack.c.l.b16 %v749
    %v789 = vunpack.c.l.b16 %v750
    %v790 = vunpack.c.l.b16 %v751
    %v791 = vunpack.c.l.b16 %v752
    %v792 = vunpack.c.l.b16 %v753
    %v793 = vunpack.c.l.b16 %v754
    %v794 = vunpack.c.l.b16 %v755
    %v795 = vunpack.c.l.b16 %v756
    %v796 = vunpack.c.l.b16 %v757
    %v797 = vunpack.c.l.b16 %v758
    %v798 = vunpack.c.l.b16 %v759
    %v799 = vunpack.c.l.b16 %v760
    %v800 = vunpack.c.l.b16 %v761
    %v801 = vunpack.c.l.b16 %v762
    %v802 = vpack.c.b16 %v787, %v786
    %v803 = vpack.c.b16 %v789, %v788
    %v804 = vpack.c.b16 %v791, %v790
    %v805 = vpack.c.b16 %v793, %v792
    %v806 = vpack.c.b16 %v795, %v794
    %v807 = vpack.c.b16 %v797, %v796
    %v808 = vpack.c.b16 %v799, %v798
    %v809 = vpack.c.b16 %v801, %v800
    %818 = vmatprep.subr.bf16.mxu0 0
    %819 = vmatpush1.bf16.msra.mxu0 %v809
    %820 = vmatprep.subr.bf16.mxu0 0
    %821 = vmatpush1.bf16.msra.mxu0 %v808
    %822 = vmatprep.subr.bf16.mxu0 0
    %823 = vmatpush1.bf16.msra.mxu0 %v807
    %824 = vmatprep.subr.bf16.mxu0 0
    %825 = vmatpush1.bf16.msra.mxu0 %v806
    %826 = vmatprep.subr.bf16.mxu0 0
    %827 = vmatpush1.bf16.msra.mxu0 %v805
    %828 = vmatprep.subr.bf16.mxu0 0
    %829 = vmatpush1.bf16.msra.mxu0 %v804
    %830 = vmatprep.subr.bf16.mxu0 0
    %831 = vmatpush1.bf16.msra.mxu0 %v803
    %832 = vmatprep.subr.bf16.mxu0 0
    %833 = vmatpush1.bf16.msra.mxu0 %v802
    %834 = vmatprep.subr.bf16.mxu0 0
    %835 = vmatpush2.bf16.msra.mxu0 0
    %836 = vmatprep.subr.bf16.mxu0 0
    %837 = vmatpush2.bf16.msra.mxu0 0
    %838 = vmatprep.subr.bf16.mxu0 0
    %839 = vmatpush2.bf16.msra.mxu0 0
    %840 = vmatprep.subr.bf16.mxu0 0
    %841 = vmatpush2.bf16.msra.mxu0 0
    %842 = vmatprep.subr.bf16.mxu0 0
    %843 = vmatpush2.bf16.msra.mxu0 0
    %844 = vmatprep.subr.bf16.mxu0 0
    %845 = vmatpush2.bf16.msra.mxu0 0
    %846 = vmatprep.subr.bf16.mxu0 0
    %847 = vmatpush2.bf16.msra.mxu0 0
    %848 = vmatprep.subr.bf16.mxu0 0
    %849 = vmatpush2.bf16.msra.mxu0 0
    %850 = vmatprep.mubr.bf16.mxu0 0
    %851 = vmatmul.mubr.bf16.gmra.mxu0 %v746
    %v852 = vpop.f32.mrf.mxu0
    %v853 = vadd.f32 %v768, %v852
    %v854 = vpop.f32.mrf.mxu0
    %v855 = vpop.f32.mrf.mxu0
    %v856 = vpop.f32.mrf.mxu0
    %857 = vdwg.mxu0
    %v858 = vlaneseq
    %v859 = vand.u32 %v858, 127
    %vm860 = vcmp.lt.s32.totalorder %v859, 10
    %v861 = vsel %vm860, %v853, -inf
    %862 = vmax.xlane.f32.xlu0 %v861
    %v863 = vpop.xlane.xlu0 %862
    %v864 = vsub.f32 %v861, %v863
    %v865 = vmul.f32 %v864, 1.442695
    %v866 = vpow.pop %v865
    %867 = vadd.xlane.f32.xlu0 %v866
    %v868 = vpop.xlane.xlu0 %867
    %v869 = vlog2.pop %v868
    %v870 = vmul.f32 %v869, 0.6931472
    %v871 = vsub.f32 %v864, %v870
    %v872 = vsel %vm860, %v871, 0.0
    %873 = vst [vmem:[%s7] sm:$0xff] %v872
    // Predicated region
    $region34: #{net_forward.1} parent=1 // pred_check
      _
    $region35: #{net_forward.1} parent=1 // pred_check_branch
      %875 = sbr.rel (0) target = $region37
    $region36: #{net_forward.1} parent=1 // pred_region
      _
    $region37: #{net_forward.1} parent=1 // pred_fallthru
      _
    // Predicated region
    $region38: #{net_forward.1} parent=1 // pred_check
      _
    $region39: #{net_forward.1} parent=1 // pred_check_branch
      %877 = sbr.rel (0) target = $region41
    $region40: #{net_forward.1} parent=1 // pred_region
      _
    $region41: #{net_forward.1} parent=1 // pred_fallthru
      _
    %878 = vsyncpa [#allocation3], 1

</llo_original>
